<compile_context>
chip_gen: v5e
topology: v5e:2x2
jax: 0.10.0
libtpu: 0.0.40
codegen_flags: <defaults>
</compile_context>

<pallas_src>
import math
import functools

import jax
import jax.numpy as jnp
from jax import lax
from jax.experimental import pallas as pl
from jax.experimental.pallas import tpu as pltpu

_NEG_BIG = -1e30  # large finite negative mask value (safe with tiling)


# ----------------------------------------------------------------------------
# Kernel 1: fused QKV projection (hoisted out of the attention kernel)
# ----------------------------------------------------------------------------
def _qkv_proj_kernel(x_ref, w_ref, b_ref, q_ref, k_ref, v_ref, *, scale):
    """One (batch, row-block) step.

    x_ref : (1, TB, C)  bf16
    w_ref : (C, 3C)     bf16  (PyTorch (out,in) weight pre-transposed to (in,out))
    b_ref : (1, 3C)     f32
    q/k/v_ref : (1, TB, C) bf16 outputs; q is pre-scaled by 1/sqrt(D).
    """
    C = q_ref.shape[2]
    qkv = jnp.dot(x_ref[0], w_ref[...],
                  preferred_element_type=jnp.float32) + b_ref[...]   # (TB, 3C) f32
    q_ref[0] = (qkv[:, 0 * C:1 * C] * scale).astype(q_ref.dtype)
    k_ref[0] = qkv[:, 1 * C:2 * C].astype(k_ref.dtype)
    v_ref[0] = qkv[:, 2 * C:3 * C].astype(v_ref.dtype)


# ----------------------------------------------------------------------------
# Kernel 2: causal flash attention (bounded KV range) + output projection
# ----------------------------------------------------------------------------
def _attn_kernel(q_ref, k_ref, v_ref, wp_ref, bp_ref, o_ref, *, n_head):
    """One (batch, query-block) step.

    q_ref : (1, TQ, C) bf16 (pre-scaled)       k_ref/v_ref : (1, T, C) bf16
    wp_ref: (C, C) bf16        bp_ref: (1, C) f32        o_ref: (1, TQ, C) f32
    """
    TQ = q_ref.shape[1]
    C = q_ref.shape[2]
    D = C // n_head

    qi = pl.program_id(1)
    diag = pl.multiple_of(qi * TQ, TQ)

    # Lane-dense (TQ, C) loads, sliced per head as values below.
    q_all = q_ref[0]                                  # (TQ, C) bf16
    k_diag = k_ref[0, pl.ds(diag, TQ), :]             # (TQ, C) bf16
    v_diag = v_ref[0, pl.ds(diag, TQ), :]             # (TQ, C) bf16

    # Causal mask is only needed on the diagonal (TQ, TQ) block.
    row = lax.broadcasted_iota(jnp.int32, (TQ, TQ), 0)
    col = lax.broadcasted_iota(jnp.int32, (TQ, TQ), 1)
    causal = row >= col

    head_outs = []
    for h in range(n_head):
        sl = slice(h * D, (h + 1) * D)
        qh = q_all[:, sl]                             # (TQ, D) bf16

        # --- diagonal block (masked); initializes the online-softmax state ---
        s = lax.dot_general(qh, k_diag[:, sl], (((1,), (1,)), ((), ())),
                            preferred_element_type=jnp.float32)      # (TQ, TQ)
        s = jnp.where(causal, s, _NEG_BIG)
        m = jnp.max(s, axis=-1, keepdims=True)
        p = jnp.exp(s - m)
        l = jnp.sum(p, axis=-1, keepdims=True)
        acc = jnp.dot(p.astype(jnp.bfloat16), v_diag[:, sl],
                      preferred_element_type=jnp.float32)            # (TQ, D)

        # --- strictly-below-diagonal KV blocks: unmasked, online softmax ---
        def kv_step(j, carry, sl=sl, qh=qh):
            m_i, l_i, acc_i = carry
            off = pl.multiple_of(j * TQ, TQ)
            kj = k_ref[0, pl.ds(off, TQ), sl]                        # (TQ, D)
            vj = v_ref[0, pl.ds(off, TQ), sl]
            sj = lax.dot_general(qh, kj, (((1,), (1,)), ((), ())),
                                 preferred_element_type=jnp.float32)  # (TQ, TQ)
            m_new = jnp.maximum(m_i, jnp.max(sj, axis=-1, keepdims=True))
            alpha = jnp.exp(m_i - m_new)
            pj = jnp.exp(sj - m_new)
            l_new = alpha * l_i + jnp.sum(pj, axis=-1, keepdims=True)
            acc_new = alpha * acc_i + jnp.dot(pj.astype(jnp.bfloat16), vj,
                                              preferred_element_type=jnp.float32)
            return m_new, l_new, acc_new

        m, l, acc = lax.fori_loop(0, qi, kv_step, (m, l, acc))

        # Deferred normalization (EUP reciprocal slot).
        head_outs.append(acc * pl.reciprocal(l, approx=True))        # (TQ, D) f32

    # Lane-dense (TQ, C) slab feeding the fused output projection.
    y = jnp.concatenate(head_outs, axis=-1).astype(jnp.bfloat16)     # (TQ, C)
    out = jnp.dot(y, wp_ref[...], preferred_element_type=jnp.float32) + bp_ref[...]
    o_ref[0] = out.astype(o_ref.dtype)


# ----------------------------------------------------------------------------
# Wrapper
# ----------------------------------------------------------------------------
def _vmem_limit_bytes():
    try:
        cap = int(pltpu.get_tpu_info().vmem_capacity_bytes)
    except Exception:
        cap = 64 * 1024 * 1024
    return max(32 * 1024 * 1024, (cap * 3) // 4)     # ~25% headroom


def _default_block_q(T):
    pref = 128
    try:
        kind = jax.devices()[0].device_kind.lower()
        if ("v6" in kind) or ("v7" in kind):
            pref = 256                                # 256-wide MXU generations
    except Exception:
        pass
    bq = min(pref, T)
    while bq > 8 and T % bq:
        bq //= 2
    return bq if T % bq == 0 else T


def causal_self_attention(x, w_qkv, b_qkv, w_proj, b_proj, *, n_head,
                          block_q=None):
    """x: (B, T, C) f32.  w_qkv: (3C, C), w_proj: (C, C) in PyTorch (out, in) layout."""
    B, T, C = x.shape
    assert C % n_head == 0
    D = C // n_head
    if block_q is None:
        block_q = _default_block_q(T)
    assert T % block_q == 0 and (block_q % 8 == 0 or block_q == T)
    nq = T // block_q

    # Parameter prep: (out, in) -> (in, out); MXU feeds in bf16.
    w_qkv_t = jnp.transpose(w_qkv).astype(jnp.bfloat16)          # (C, 3C)
    b_qkv_r = b_qkv.reshape(1, 3 * C).astype(jnp.float32)
    wp = jnp.transpose(w_proj).astype(jnp.bfloat16)              # (C, C)
    bp = b_proj.reshape(1, C).astype(jnp.float32)
    x_bf16 = x.astype(jnp.bfloat16)   # NOTE: activations see bf16 input precision.

    vmem_limit = _vmem_limit_bytes()
    const = lambda b, q: (0, 0)       # noqa: E731  resident weight/bias blocks
    rowblk = lambda b, q: (b, q, 0)   # noqa: E731

    # --- 1) fused QKV projection ---
    q, k, v = pl.pallas_call(
        functools.partial(_qkv_proj_kernel, scale=1.0 / math.sqrt(D)),
        out_shape=(jax.ShapeDtypeStruct((B, T, C), jnp.bfloat16),
                   jax.ShapeDtypeStruct((B, T, C), jnp.bfloat16),
                   jax.ShapeDtypeStruct((B, T, C), jnp.bfloat16)),
        grid=(B, nq),
        in_specs=[
            pl.BlockSpec((1, block_q, C), rowblk),               # x row block
            pl.BlockSpec((C, 3 * C), const),                     # w_qkv^T
            pl.BlockSpec((1, 3 * C), const),                     # b_qkv
        ],
        out_specs=(pl.BlockSpec((1, block_q, C), rowblk),
                   pl.BlockSpec((1, block_q, C), rowblk),
                   pl.BlockSpec((1, block_q, C), rowblk)),
        compiler_params=pltpu.CompilerParams(
            dimension_semantics=("parallel", "parallel"),
            vmem_limit_bytes=vmem_limit),
    )(x_bf16, w_qkv_t, b_qkv_r)

    # --- 2) bounded-KV causal attention + output projection ---
    return pl.pallas_call(
        functools.partial(_attn_kernel, n_head=n_head),
        out_shape=jax.ShapeDtypeStruct((B, T, C), x.dtype),
        grid=(B, nq),
        in_specs=[
            pl.BlockSpec((1, block_q, C), rowblk),               # q block
            pl.BlockSpec((1, T, C), lambda b, q: (b, 0, 0)),     # k (full seq, bf16)
            pl.BlockSpec((1, T, C), lambda b, q: (b, 0, 0)),     # v (full seq, bf16)
            pl.BlockSpec((C, C), const),                         # w_proj^T
            pl.BlockSpec((1, C), const),                         # b_proj
        ],
        out_specs=pl.BlockSpec((1, block_q, C), rowblk),
        compiler_params=pltpu.CompilerParams(
            dimension_semantics=("parallel", "parallel"),
            vmem_limit_bytes=vmem_limit),
    )(q, k, v, wp, bp)


# ----------------------------------------------------------------------------
# Reference + test
# ----------------------------------------------------------------------------
def _reference(x, w_qkv, b_qkv, w_proj, b_proj, n_head):
    """Plain-JAX f32 reference mirroring the PyTorch forward."""
    B, T, C = x.shape
    D = C // n_head
    qkv = x @ w_qkv.T + b_qkv
    q, k, v = jnp.split(qkv, 3, axis=-1)

    def heads(t):
        return t.reshape(B, T, n_head, D).transpose(0, 2, 1, 3)

    q, k, v = heads(q), heads(k), heads(v)
    s = (q @ jnp.swapaxes(k, -1, -2)) / math.sqrt(D)
    mask = jnp.tril(jnp.ones((T, T), dtype=bool))
    s = jnp.where(mask, s, -jnp.inf)
    p = jax.nn.softmax(s, axis=-1)
    y = (p @ v).transpose(0, 2, 1, 3).reshape(B, T, C)
    return y @ w_proj.T + b_proj


if __name__ == "__main__":
    # Small config: n_embd=32, n_head=4, seq T=16 (2 query blocks of 8), batch B=2.
    B, T, C, n_head = 2, 16, 32, 4

    key = jax.random.PRNGKey(0)
    kx, kw1, kb1, kw2, kb2 = jax.random.split(key, 5)

    x = jax.random.normal(kx, (B, T, C), dtype=jnp.float32)
    # PyTorch Linear weight layout: (out, in).
    w_qkv = 0.02 * jax.random.normal(kw1, (3 * C, C), dtype=jnp.float32)
    b_qkv = 0.02 * jax.random.normal(kb1, (3 * C,), dtype=jnp.float32)
    w_proj = 0.02 * jax.random.normal(kw2, (C, C), dtype=jnp.float32)
    b_proj = 0.02 * jax.random.normal(kb2, (C,), dtype=jnp.float32)

    out = causal_self_attention(x, w_qkv, b_qkv, w_proj, b_proj,
                                n_head=n_head, block_q=8)
    out = jax.block_until_ready(out)

    ref = _reference(x, w_qkv, b_qkv, w_proj, b_proj, n_head)
    assert out.shape == (B, T, C)
    # bf16 MXU feeds + approx reciprocal -> loose (but meaningful) tolerance vs f32 ref.
    assert jnp.allclose(out, ref, atol=2e-2, rtol=2e-2), "mismatch vs JAX reference"

    print("KERNEL_OK")
</pallas_src>

<mosaic_0001>
module attributes {stable_mosaic.version = 11 : i64} {
  func.func @_qkv_proj_kernel(%arg0: i32, %arg1: i32, %arg2: memref<1x8x32xbf16, #tpu.memory_space<vmem>>, %arg3: memref<32x96xbf16, #tpu.memory_space<vmem>>, %arg4: memref<1x96xf32, #tpu.memory_space<vmem>>, %arg5: memref<1x8x32xbf16, #tpu.memory_space<vmem>>, %arg6: memref<1x8x32xbf16, #tpu.memory_space<vmem>>, %arg7: memref<1x8x32xbf16, #tpu.memory_space<vmem>>) attributes {dimension_semantics = [#tpu.dimension_semantics<parallel>, #tpu.dimension_semantics<parallel>], iteration_bounds = array<i64: 2, 2>, scalar_prefetch = 0 : i64, scratch_operands = 0 : i64, tpu.core_type = #tpu.core_type<tc>, window_params = [{transform_indices = @transform_0, window_bounds = array<i64: 1, 8, 32>}, {pipeline_mode = #tpu.pipeline_mode<synchronous>, transform_indices = @transform_1, window_bounds = array<i64: 32, 96>}, {pipeline_mode = #tpu.pipeline_mode<synchronous>, transform_indices = @transform_2, window_bounds = array<i64: 1, 96>}, {transform_indices = @transform_3, window_bounds = array<i64: 1, 8, 32>}, {transform_indices = @transform_4, window_bounds = array<i64: 1, 8, 32>}, {transform_indices = @transform_5, window_bounds = array<i64: 1, 8, 32>}]} {
    %c0 = arith.constant 0 : index
    %c0_0 = arith.constant 0 : index
    %c0_1 = arith.constant 0 : index
    %0 = vector.load %arg2[%c0, %c0_0, %c0_1] : memref<1x8x32xbf16, #tpu.memory_space<vmem>>, vector<1x8x32xbf16>
    %1 = vector.shape_cast %0 : vector<1x8x32xbf16> to vector<8x32xbf16>
    %c0_2 = arith.constant 0 : index
    %c0_3 = arith.constant 0 : index
    %2 = vector.load %arg3[%c0_2, %c0_3] : memref<32x96xbf16, #tpu.memory_space<vmem>>, vector<32x96xbf16>
    %cst = arith.constant dense<0.000000e+00> : vector<8x96xf32>
    %3 = tpu.matmul %1, %2, %cst {dimension_numbers = #tpu.dot_dimension_numbers<[1], [0], [0], [1], [0, 0, 1, 1], [], []>} : vector<8x32xbf16>, vector<32x96xbf16>, vector<8x96xf32> -> vector<8x96xf32>
    %c0_4 = arith.constant 0 : index
    %c0_5 = arith.constant 0 : index
    %4 = vector.load %arg4[%c0_4, %c0_5] : memref<1x96xf32, #tpu.memory_space<vmem>>, vector<1x96xf32>
    %5 = vector.broadcast %4 : vector<1x96xf32> to vector<8x96xf32>
    %6 = arith.addf %3, %5 : vector<8x96xf32>
    %7 = vector.extract_strided_slice %6 {offsets = [0, 0], sizes = [8, 32], strides = [1, 1]} : vector<8x96xf32> to vector<8x32xf32>
    %cst_6 = arith.constant 0.353553385 : f32
    %8 = vector.broadcast %cst_6 : f32 to vector<8x32xf32>
    %9 = arith.mulf %7, %8 : vector<8x32xf32>
    %10 = arith.truncf %9 : vector<8x32xf32> to vector<8x32xbf16>
    %c0_7 = arith.constant 0 : index
    %c0_8 = arith.constant 0 : index
    %c0_9 = arith.constant 0 : index
    %11 = vector.load %arg5[%c0_7, %c0_8, %c0_9] : memref<1x8x32xbf16, #tpu.memory_space<vmem>>, vector<1x8x32xbf16>
    %12 = vector.shape_cast %11 : vector<1x8x32xbf16> to vector<8x32xbf16>
    %13 = vector.shape_cast %10 : vector<8x32xbf16> to vector<1x8x32xbf16>
    tpu.vector_store %arg5[%c0_7, %c0_8, %c0_9], %13 {strides = array<i32>} : memref<1x8x32xbf16, #tpu.memory_space<vmem>>, vector<1x8x32xbf16>,
    %14 = vector.extract_strided_slice %6 {offsets = [0, 32], sizes = [8, 32], strides = [1, 1]} : vector<8x96xf32> to vector<8x32xf32>
    %15 = arith.truncf %14 : vector<8x32xf32> to vector<8x32xbf16>
    %c0_10 = arith.constant 0 : index
    %c0_11 = arith.constant 0 : index
    %c0_12 = arith.constant 0 : index
    %16 = vector.load %arg6[%c0_10, %c0_11, %c0_12] : memref<1x8x32xbf16, #tpu.memory_space<vmem>>, vector<1x8x32xbf16>
    %17 = vector.shape_cast %16 : vector<1x8x32xbf16> to vector<8x32xbf16>
    %18 = vector.shape_cast %15 : vector<8x32xbf16> to vector<1x8x32xbf16>
    tpu.vector_store %arg6[%c0_10, %c0_11, %c0_12], %18 {strides = array<i32>} : memref<1x8x32xbf16, #tpu.memory_space<vmem>>, vector<1x8x32xbf16>,
    %19 = vector.extract_strided_slice %6 {offsets = [0, 64], sizes = [8, 32], strides = [1, 1]} : vector<8x96xf32> to vector<8x32xf32>
    %20 = arith.truncf %19 : vector<8x32xf32> to vector<8x32xbf16>
    %c0_13 = arith.constant 0 : index
    %c0_14 = arith.constant 0 : index
    %c0_15 = arith.constant 0 : index
    %21 = vector.load %arg7[%c0_13, %c0_14, %c0_15] : memref<1x8x32xbf16, #tpu.memory_space<vmem>>, vector<1x8x32xbf16>
    %22 = vector.shape_cast %21 : vector<1x8x32xbf16> to vector<8x32xbf16>
    %23 = vector.shape_cast %20 : vector<8x32xbf16> to vector<1x8x32xbf16>
    tpu.vector_store %arg7[%c0_13, %c0_14, %c0_15], %23 {strides = array<i32>} : memref<1x8x32xbf16, #tpu.memory_space<vmem>>, vector<1x8x32xbf16>,
    return
  }
  func.func @transform_0(%arg0: i32, %arg1: i32) -> (i32, i32, i32) {
    %c0_i32 = arith.constant 0 : i32
    %c0_i32_0 = arith.constant 0 : i32
    return %arg0, %arg1, %c0_i32 : i32, i32, i32
  }
  func.func @transform_1(%arg0: i32, %arg1: i32) -> (i32, i32) {
    %c0_i32 = arith.constant 0 : i32
    %c0_i32_0 = arith.constant 0 : i32
    %c0_i32_1 = arith.constant 0 : i32
    return %c0_i32, %c0_i32_0 : i32, i32
  }
  func.func @transform_2(%arg0: i32, %arg1: i32) -> (i32, i32) {
    %c0_i32 = arith.constant 0 : i32
    %c0_i32_0 = arith.constant 0 : i32
    %c0_i32_1 = arith.constant 0 : i32
    return %c0_i32, %c0_i32_0 : i32, i32
  }
  func.func @transform_3(%arg0: i32, %arg1: i32) -> (i32, i32, i32) {
    %c0_i32 = arith.constant 0 : i32
    %c0_i32_0 = arith.constant 0 : i32
    return %arg0, %arg1, %c0_i32 : i32, i32, i32
  }
  func.func @transform_4(%arg0: i32, %arg1: i32) -> (i32, i32, i32) {
    %c0_i32 = arith.constant 0 : i32
    %c0_i32_0 = arith.constant 0 : i32
    return %arg0, %arg1, %c0_i32 : i32, i32, i32
  }
  func.func @transform_5(%arg0: i32, %arg1: i32) -> (i32, i32, i32) {
    %c0_i32 = arith.constant 0 : i32
    %c0_i32_0 = arith.constant 0 : i32
    return %arg0, %arg1, %c0_i32 : i32, i32, i32
  }
}

</mosaic_0001>

<llo_original>
// kernel: tpu_custom_call.1
$region0: #{tpu_custom_call.1}
  #allocation0 [shape = 'u32[]', space=smem, size = 0x4, offset = 0x4, fixed_abs, tag = 'smem constant byte address 0x4 - core index']
  #allocation1 [shape = 'u32[72,128]{1,0:T(1,128)}', space=vmem, size = 0x9000, scoped, tag = 'internal scratch']
  %s0 = inlined_call_operand.hbm [shape: bf16[2,16,32], index: 0, kind: input, shape index: {}]
  %s1 = inlined_call_operand.hbm [shape: bf16[32,96], index: 1, kind: input, shape index: {}]
  %s2 = inlined_call_operand.vmem [shape: f32[1,96], index: 2, kind: input, shape index: {}]
  %s3 = inlined_call_operand.hbm [shape: bf16[2,16,32], index: 3, kind: output, shape index: {0}]
  %s4 = inlined_call_operand.hbm [shape: bf16[2,16,32], index: 4, kind: output, shape index: {1}]
  %s5 = inlined_call_operand.hbm [shape: bf16[2,16,32], index: 5, kind: output, shape index: {2}]
  %6 = xla_tuple %s3, %s4, %s5
  %s7 = sld [smem:[#allocation0]]
  $region69: #{tpu_custom_call.1} parent=0
    _
  %s9 = ssub.s32 1, %s7
  %s10 = scalar_select 0, %s9, %s7
  $region1: #{tpu_custom_call.1} parent=0
    #allocation2 [shape = 'u8[4096]{0}', space=vmem, size = 0x1000, scoped, tag = 'input window, operand 0']
    #allocation3 [shape = 's32[2]{0}', space=sflag, size = 0x8, scoped, tag = 'scoped memory for tpu_custom_call.1']
    #allocation4 [shape = 's32[2]{0}', space=sflag, size = 0x8, scoped, tag = 'scoped memory for tpu_custom_call.1']
    #allocation5 [shape = 'u8[8192]{0}', space=vmem, size = 0x2000, scoped, tag = 'input window, operand 1, single buffered']
    #allocation6 [shape = 's32[1]{0}', space=sflag, size = 0x4, scoped, tag = 'scoped memory for tpu_custom_call.1']
    #allocation7 [shape = 'u8[4096]{0}', space=vmem, size = 0x1000, scoped, tag = 'output window, operand 0']
    #allocation8 [shape = 'u8[4096]{0}', space=vmem, size = 0x1000, scoped, tag = 'output window, operand 1']
    #allocation9 [shape = 's32[2]{0}', space=sflag, size = 0x8, scoped, tag = 'scoped memory for tpu_custom_call.1']
    #allocation10 [shape = 'u8[4096]{0}', space=vmem, size = 0x1000, scoped, tag = 'output window, operand 2']
    %11 = vsyncpa [#allocation3], 0
    %s12 = scalar_lea.sflag [#allocation3], 1
    %13 = vsyncpa %s12, 0
    %14 = vsyncpa [#allocation6], 0
    %15 = vsyncpa [#allocation4], 0
    %s16 = scalar_lea.sflag [#allocation4], 1
    %17 = vsyncpa %s16, 0
    %18 = vsyncpa [#allocation9], 0
    %s19 = scalar_lea.sflag [#allocation9], 1
    %20 = vsyncpa %s19, 0
    loop: start=0, step=1, limit=6
    $region2: #{tpu_custom_call.1} parent=1 // loop_pre_header
      _
    $region3: #{tpu_custom_call.1} parent=1 // loop_header
      %s22 = sphi 0, %s26
      %p23 = scmp.ge.s32.totalorder %s22, 6
      %s29 = sphi 0, %s41
      %s30 = sphi 0, %s37
      %s31 = sphi 0, %s29
      %s32 = sphi 0, %s30
      %s33 = sphi 0, %s31
      %s34 = sphi 0, %s32
      %s46 = sphi 0, %s48
      %s49 = sphi 0, %s46
      %s50 = sphi 0, %s49
      %s66 = sphi 0, %s50
      %s70 = sphi 0, %s70
      %s72 = sphi 0, %s70
      %s73 = sphi 0, %s72
      %s87 = sphi 0, %s73
      %s91 = sphi 0, %s91
      %s93 = sphi 0, %s91
      %s94 = sphi 0, %s93
      %s108 = sphi 0, %s94
      %s116 = sphi 0, %s118
      %s119 = sphi 0, %s116
      %s120 = sphi 0, %s119
      %s136 = sphi 0, %s120
      %s144 = sphi 0, %s146
      %s147 = sphi 0, %s144
      %s148 = sphi 0, %s147
      %s164 = sphi 0, %s148
      %s172 = sphi 0, %s174
      %s175 = sphi 0, %s172
      %s176 = sphi 0, %s175
      %s192 = sphi 0, %s176
    $region4: #{tpu_custom_call.1} parent=1 // loop_header_branch
      %25 = sbr.rel (%p23) target = $region8
    $region5: #{tpu_custom_call.1} parent=1 // loop_body
      %s27 = ssub.s32 %s22, 1
      %s28 = ssub.s32 %s22, 2
      %s35 = sadd.s32 1, %s30
      %p36 = scmp.ge.s32.totalorder %s35, 2
      %s37 = scalar_select %p36, 0, %s35
      %s38 = sadd.s32 1, %s29
      %s39 = scalar_select %p36, %s38, %s29
      %p40 = scmp.ge.s32.totalorder %s39, 2
      %s41 = scalar_select %p40, 0, %s39
      %s42 = ssub.s32 %s29, %s41
      %s43 = ssub.s32 %s30, %s37
      %s44 = sor.u32 %s42, %s43
      %p45 = scmp.eq.s32.totalorder %s44, 0
      %s47 = sadd.s32 %s46, 1
      %s48 = scalar_select %p45, %s46, %s47
      %p51 = pneg %p45
      %p52 = scmp.eq.s32.totalorder %s22, 3
      %p53 = por %p51, %p52
      %p54 = scmp.ne.s32.totalorder %s46, %s49
      %p55 = scmp.eq.s32.totalorder %s22, 0
      %p56 = por %p54, %p55
      %p57 = scmp.ne.s32.totalorder %s46, %s49
      %p58 = scmp.eq.s32.totalorder %s27, 3
      %p59 = por %p57, %p58
      %p60 = scmp.ne.s32.totalorder %s49, %s50
      %p61 = scmp.eq.s32.totalorder %s27, 0
      %p62 = por %p60, %p61
      %p63 = scmp.ne.s32.totalorder %s49, %s50
      %p64 = scmp.eq.s32.totalorder %s28, 3
      %p65 = por %p63, %p64
      %p67 = scmp.ne.s32.totalorder %s50, %s66
      %p68 = scmp.eq.s32.totalorder %s28, 0
      %p69 = por %p67, %p68
      %s71 = sadd.s32 %s70, 1
      %p74 = scmp.eq.s32.totalorder %s22, 3
      %p75 = scmp.ne.s32.totalorder %s70, %s72
      %p76 = scmp.eq.s32.totalorder %s22, 0
      %p77 = por %p75, %p76
      %p78 = scmp.ne.s32.totalorder %s70, %s72
      %p79 = scmp.eq.s32.totalorder %s27, 3
      %p80 = por %p78, %p79
      %p81 = scmp.ne.s32.totalorder %s72, %s73
      %p82 = scmp.eq.s32.totalorder %s27, 0
      %p83 = por %p81, %p82
      %p84 = scmp.ne.s32.totalorder %s72, %s73
      %p85 = scmp.eq.s32.totalorder %s28, 3
      %p86 = por %p84, %p85
      %p88 = scmp.ne.s32.totalorder %s73, %s87
      %p89 = scmp.eq.s32.totalorder %s28, 0
      %p90 = por %p88, %p89
      %s92 = sadd.s32 %s91, 1
      %p95 = scmp.eq.s32.totalorder %s22, 3
      %p96 = scmp.ne.s32.totalorder %s91, %s93
      %p97 = scmp.eq.s32.totalorder %s22, 0
      %p98 = por %p96, %p97
      %p99 = scmp.ne.s32.totalorder %s91, %s93
      %p100 = scmp.eq.s32.totalorder %s27, 3
      %p101 = por %p99, %p100
      %p102 = scmp.ne.s32.totalorder %s93, %s94
      %p103 = scmp.eq.s32.totalorder %s27, 0
      %p104 = por %p102, %p103
      %p105 = scmp.ne.s32.totalorder %s93, %s94
      %p106 = scmp.eq.s32.totalorder %s28, 3
      %p107 = por %p105, %p106
      %p109 = scmp.ne.s32.totalorder %s94, %s108
      %p110 = scmp.eq.s32.totalorder %s28, 0
      %p111 = por %p109, %p110
      %s112 = ssub.s32 %s29, %s41
      %s113 = ssub.s32 %s30, %s37
      %s114 = sor.u32 %s112, %s113
      %p115 = scmp.eq.s32.totalorder %s114, 0
      %s117 = sadd.s32 %s116, 1
      %s118 = scalar_select %p115, %s116, %s117
      %p121 = pneg %p115
      %p122 = scmp.eq.s32.totalorder %s22, 3
      %p123 = por %p121, %p122
      %p124 = scmp.ne.s32.totalorder %s116, %s119
      %p125 = scmp.eq.s32.totalorder %s22, 0
      %p126 = por %p124, %p125
      %p127 = scmp.ne.s32.totalorder %s116, %s119
      %p128 = scmp.eq.s32.totalorder %s27, 3
      %p129 = por %p127, %p128
      %p130 = scmp.ne.s32.totalorder %s119, %s120
      %p131 = scmp.eq.s32.totalorder %s27, 0
      %p132 = por %p130, %p131
      %p133 = scmp.ne.s32.totalorder %s119, %s120
      %p134 = scmp.eq.s32.totalorder %s28, 3
      %p135 = por %p133, %p134
      %p137 = scmp.ne.s32.totalorder %s120, %s136
      %p138 = scmp.eq.s32.totalorder %s28, 0
      %p139 = por %p137, %p138
      %s140 = ssub.s32 %s29, %s41
      %s141 = ssub.s32 %s30, %s37
      %s142 = sor.u32 %s140, %s141
      %p143 = scmp.eq.s32.totalorder %s142, 0
      %s145 = sadd.s32 %s144, 1
      %s146 = scalar_select %p143, %s144, %s145
      %p149 = pneg %p143
      %p150 = scmp.eq.s32.totalorder %s22, 3
      %p151 = por %p149, %p150
      %p152 = scmp.ne.s32.totalorder %s144, %s147
      %p153 = scmp.eq.s32.totalorder %s22, 0
      %p154 = por %p152, %p153
      %p155 = scmp.ne.s32.totalorder %s144, %s147
      %p156 = scmp.eq.s32.totalorder %s27, 3
      %p157 = por %p155, %p156
      %p158 = scmp.ne.s32.totalorder %s147, %s148
      %p159 = scmp.eq.s32.totalorder %s27, 0
      %p160 = por %p158, %p159
      %p161 = scmp.ne.s32.totalorder %s147, %s148
      %p162 = scmp.eq.s32.totalorder %s28, 3
      %p163 = por %p161, %p162
      %p165 = scmp.ne.s32.totalorder %s148, %s164
      %p166 = scmp.eq.s32.totalorder %s28, 0
      %p167 = por %p165, %p166
      %s168 = ssub.s32 %s29, %s41
      %s169 = ssub.s32 %s30, %s37
      %s170 = sor.u32 %s168, %s169
      %p171 = scmp.eq.s32.totalorder %s170, 0
      %s173 = sadd.s32 %s172, 1
      %s174 = scalar_select %p171, %s172, %s173
      %p177 = pneg %p171
      %p178 = scmp.eq.s32.totalorder %s22, 3
      %p179 = por %p177, %p178
      %p180 = scmp.ne.s32.totalorder %s172, %s175
      %p181 = scmp.eq.s32.totalorder %s22, 0
      %p182 = por %p180, %p181
      %p183 = scmp.ne.s32.totalorder %s172, %s175
      %p184 = scmp.eq.s32.totalorder %s27, 3
      %p185 = por %p183, %p184
      %p186 = scmp.ne.s32.totalorder %s175, %s176
      %p187 = scmp.eq.s32.totalorder %s27, 0
      %p188 = por %p186, %p187
      %p189 = scmp.ne.s32.totalorder %s175, %s176
      %p190 = scmp.eq.s32.totalorder %s28, 3
      %p191 = por %p189, %p190
      %p193 = scmp.ne.s32.totalorder %s176, %s192
      %p194 = scmp.eq.s32.totalorder %s28, 0
      %p195 = por %p193, %p194
      %p196 = scmp.le.s32.totalorder 1, %s22
      %p197 = scmp.lt.s32.totalorder %s22, 5
      %p198 = pnand %p196, %p197
      %p199 = pneg %p198
      // Predicated region
      $region9: #{tpu_custom_call.1} parent=5 // pred_check
        _
      $region10: #{tpu_custom_call.1} parent=5 // pred_check_branch
        %201 = sbr.rel (%p198) target = $region12
      $region11: #{tpu_custom_call.1} parent=5 // pred_region
        %s202 = ssub.s32 %s22, 1
        // Predicated region
        $region13: #{tpu_custom_call.1} parent=11 // pred_check
          %p203 = pneg %p83
        $region14: #{tpu_custom_call.1} parent=11 // pred_check_branch
          %205 = sbr.rel (%p203) target = $region16
        $region15: #{tpu_custom_call.1} parent=11 // pred_region
          %207 = vsyncadd [#allocation6], 0
          %s208 = sshll.u32 %s1, 4
          %s209 = int_to_ptr.hbm [resolvable:$true] %s208
          %s210 = sshll.u32 [#allocation5], 4
          %s211 = int_to_ptr.vmem [resolvable:$true] %s210
          %216 = dma.hbm_to_vmem [thread:$0]  %s209, 256, %s211, [#allocation6], 64, 64, 4
        $region16: #{tpu_custom_call.1} parent=11 // pred_fallthru
          _
        // Predicated region
        $region17: #{tpu_custom_call.1} parent=11 // pred_check
          %p217 = pneg %p104
        $region18: #{tpu_custom_call.1} parent=11 // pred_check_branch
          %219 = sbr.rel (%p217) target = $region20
        $region19: #{tpu_custom_call.1} parent=11 // pred_region
          _
        $region20: #{tpu_custom_call.1} parent=11 // pred_fallthru
          _
      $region12: #{tpu_custom_call.1} parent=5 // pred_fallthru
        _
      %p220 = scmp.lt.s32.totalorder %s22, 4
      // Predicated region
      $region21: #{tpu_custom_call.1} parent=5 // pred_check
        %p221 = pneg %p220
      $region22: #{tpu_custom_call.1} parent=5 // pred_check_branch
        %223 = sbr.rel (%p221) target = $region24
      $region23: #{tpu_custom_call.1} parent=5 // pred_region
        // Predicated region
        $region25: #{tpu_custom_call.1} parent=23 // pred_check
          %p224 = pneg %p56
        $region26: #{tpu_custom_call.1} parent=23 // pred_check_branch
          %226 = sbr.rel (%p224) target = $region28
        $region27: #{tpu_custom_call.1} parent=23 // pred_region
          %s227 = sand.u32 %s46, 1
          %s228 = scalar_lea.sflag [#allocation3], %s227
          %s229 = sand.u32 %s46, 1
          %s230 = smul.addr %s229, 4
          %s231 = scalar_lea.vmem [#allocation2], %s230
          %233 = vsyncadd %s228, 0
          %s234 = smul.addr %s29, 2
          %s235 = sadd.s32 %s30, %s234
          %s236 = smul.addr %s235, 4
          %s237 = scalar_lea.hbm %s0, %s236
          %s239 = sshll.u32 %s237, 4
          %s240 = int_to_ptr.hbm [resolvable:$true] %s239
          %s241 = sshll.u32 %s231, 4
          %s242 = int_to_ptr.vmem [resolvable:$true] %s241
          %244 = dma.hbm_to_vmem [thread:$0]  %s240, 64, %s242, %s228
        $region28: #{tpu_custom_call.1} parent=23 // pred_fallthru
          _
      $region24: #{tpu_custom_call.1} parent=5 // pred_fallthru
        _
      %p245 = scmp.le.s32.totalorder 1, %s22
      %p246 = scmp.lt.s32.totalorder %s22, 5
      %p247 = pnand %p245, %p246
      %p248 = pneg %p247
      // Predicated region
      $region29: #{tpu_custom_call.1} parent=5 // pred_check
        _
      $region30: #{tpu_custom_call.1} parent=5 // pred_check_branch
        %250 = sbr.rel (%p247) target = $region32
      $region31: #{tpu_custom_call.1} parent=5 // pred_region
        %s251 = ssub.s32 %s22, 1
        %s252 = sand.u32 %s49, 1
        %s253 = scalar_lea.sflag [#allocation3], %s252
        %s254 = sand.u32 %s49, 1
        %s255 = smul.addr %s254, 4
        %s256 = scalar_lea.vmem [#allocation2], %s255
        // Predicated region
        $region33: #{tpu_custom_call.1} parent=31 // pred_check
          %p257 = pneg %p62
        $region34: #{tpu_custom_call.1} parent=31 // pred_check_branch
          %259 = sbr.rel (%p257) target = $region36
        $region35: #{tpu_custom_call.1} parent=31 // pred_region
          %261 = dma.done %s253, 64
        $region36: #{tpu_custom_call.1} parent=31 // pred_fallthru
          _
        // Predicated region
        $region37: #{tpu_custom_call.1} parent=31 // pred_check
          %p262 = pneg %p83
        $region38: #{tpu_custom_call.1} parent=31 // pred_check_branch
          %264 = sbr.rel (%p262) target = $region40
        $region39: #{tpu_custom_call.1} parent=31 // pred_region
          %266 = dma.done [#allocation6], 256
        $region40: #{tpu_custom_call.1} parent=31 // pred_fallthru
          _
        %s267 = sand.u32 %s49, 1
        %s268 = scalar_lea.sflag [#allocation3], %s267
        %s269 = sand.u32 %s49, 1
        %s270 = smul.addr %s269, 4
        %s271 = scalar_lea.vmem [#allocation2], %s270
        %p272 = pneg %p62
        %p273 = pneg %p59
        %p274 = pneg %p83
        %p275 = pneg %p80
        %p276 = pneg %p104
        %p277 = pneg %p101
        %p278 = pneg %p132
        %p279 = pneg %p129
        %s280 = sand.u32 %s119, 1
        %s281 = scalar_lea.sflag [#allocation4], %s280
        %s282 = sand.u32 %s119, 1
        %s283 = smul.addr %s282, 4
        %s284 = scalar_lea.vmem [#allocation7], %s283
        %p285 = pneg %p160
        %p286 = pneg %p157
        %s287 = sand.u32 %s27, 1
        %s288 = scalar_lea.sflag [#allocation9], %s287
        %s289 = sand.u32 %s147, 1
        %s290 = smul.addr %s289, 4
        %s291 = scalar_lea.vmem [#allocation8], %s290
        %p292 = pneg %p188
        %p293 = pneg %p185
        %s294 = sand.u32 %s27, 1
        %s295 = scalar_lea.sflag [#allocation9], %s294
        %s296 = sand.u32 %s175, 1
        %s297 = smul.addr %s296, 4
        %s298 = scalar_lea.vmem [#allocation10], %s297
        %v300 = vld [vmem:[%s256] sm:$0xf]
        %v301 = vld [vmem:[#allocation5] sm:$0xf]
        %v302 = vld [vmem:[#allocation5 + $0x4] sm:$0xf]
        %v303 = vld [vmem:[#allocation5 + $0x8] sm:$0xf]
        %v304 = vld [vmem:[#allocation5 + $0xc] sm:$0xf]
        %v305 = vld [vmem:[%s2] sm:$0x1]
        %v307 = vperm.slane %v305, 0
        %v313 = vunpack.c.l.b16 %v301
        %v314 = vunpack.c.l.b16 %v302
        %v315 = vunpack.c.l.b16 %v303
        %v316 = vunpack.c.l.b16 %v304
        %v317 = vpack.c.b16 %v314, %v313
        %v318 = vpack.c.b16 %v316, %v315
        %vm321 = vcmask 261120
        %v323 = vsel %vm321, %v300, 0
        %325 = vmatpush.bf16.msra.mxu0 0
        %326 = vmatpush.bf16.msra.mxu0 0
        %327 = vmatpush.bf16.msra.mxu0 0
        %328 = vmatpush.bf16.msra.mxu0 0
        %329 = vmatpush.bf16.msra.mxu0 0
        %330 = vmatpush.bf16.msra.mxu0 0
        %331 = vmatpush.bf16.msra.mxu0 %v318
        %332 = vmatpush.bf16.msra.mxu0 %v317
        %333 = vmatmul.bf16.gmra.mxu0 %v323
        %v334 = vpop.f32.mrf.mxu0
        %v335 = vadd.f32 %v307, %v334
        %v336 = vpop.f32.mrf.mxu0
        %337 = vdwg.mxu0
        %v338 = vmul.f32 %v335, 0.35355338
        %v339 = vpack.c.bf16 %v338, %v338
        %vm340 = vcmask 257024
        %341 = vst.msk [vmem:[%s284] sm:$0xf] %vm340, %v339
        %v342 = vpack.c.bf16 %v335, %v335
        %344 = vrot.lane.b32.xlu0 %v342, 96
        %v345 = vpop.permute.xlu0 %344
        %347 = vst.msk [vmem:[%s291] sm:$0xf] %vm340, %v345
        %348 = vrot.lane.b32.xlu0 %v342, 64
        %v349 = vpop.permute.xlu0 %348
        %351 = vst.msk [vmem:[%s298] sm:$0xf] %vm340, %v349
        %s352 = sand.u32 %s119, 1
        %s353 = scalar_lea.sflag [#allocation4], %s352
        %s354 = sand.u32 %s119, 1
        %s355 = smul.addr %s354, 4
        %s356 = scalar_lea.vmem [#allocation7], %s355
        %s357 = sand.u32 %s27, 1
        %s358 = scalar_lea.sflag [#allocation9], %s357
        %s359 = sand.u32 %s147, 1
        %s360 = smul.addr %s359, 4
        %s361 = scalar_lea.vmem [#allocation8], %s360
        %s362 = sand.u32 %s27, 1
        %s363 = scalar_lea.sflag [#allocation9], %s362
        %s364 = sand.u32 %s175, 1
        %s365 = smul.addr %s364, 4
        %s366 = scalar_lea.vmem [#allocation10], %s365
        // Predicated region
        $region41: #{tpu_custom_call.1} parent=31 // pred_check
          %p367 = pneg %p129
        $region42: #{tpu_custom_call.1} parent=31 // pred_check_branch
          %369 = sbr.rel (%p367) target = $region44
        $region43: #{tpu_custom_call.1} parent=31 // pred_region
          %371 = vsyncadd %s353, 0
          %s372 = smul.addr %s31, 2
          %s373 = sadd.s32 %s32, %s372
          %s374 = smul.addr %s373, 4
          %s375 = scalar_lea.hbm %s3, %s374
          %s377 = sshll.u32 %s356, 4
          %s378 = int_to_ptr.vmem [resolvable:$true] %s377
          %s379 = sshll.u32 %s375, 4
          %s380 = int_to_ptr.hbm [resolvable:$true] %s379
          %382 = dma.vmem_to_hbm [thread:$0]  %s378, 64, %s380, %s353
        $region44: #{tpu_custom_call.1} parent=31 // pred_fallthru
          _
        // Predicated region
        $region45: #{tpu_custom_call.1} parent=31 // pred_check
          %p383 = pneg %p157
        $region46: #{tpu_custom_call.1} parent=31 // pred_check_branch
          %385 = sbr.rel (%p383) target = $region48
        $region47: #{tpu_custom_call.1} parent=31 // pred_region
          %387 = vsyncadd %s358, 0
          %s388 = smul.addr %s31, 2
          %s389 = sadd.s32 %s32, %s388
          %s390 = smul.addr %s389, 4
          %s391 = scalar_lea.hbm %s4, %s390
          %s393 = sshll.u32 %s361, 4
          %s394 = int_to_ptr.vmem [resolvable:$true] %s393
          %s395 = sshll.u32 %s391, 4
          %s396 = int_to_ptr.hbm [resolvable:$true] %s395
          %398 = dma.vmem_to_hbm [thread:$0]  %s394, 64, %s396, %s358
        $region48: #{tpu_custom_call.1} parent=31 // pred_fallthru
          _
        // Predicated region
        $region49: #{tpu_custom_call.1} parent=31 // pred_check
          %p399 = pneg %p185
        $region50: #{tpu_custom_call.1} parent=31 // pred_check_branch
          %401 = sbr.rel (%p399) target = $region52
        $region51: #{tpu_custom_call.1} parent=31 // pred_region
          %403 = vsyncadd %s363, 0
          %s404 = smul.addr %s31, 2
          %s405 = sadd.s32 %s32, %s404
          %s406 = smul.addr %s405, 4
          %s407 = scalar_lea.hbm %s5, %s406
          %s409 = sshll.u32 %s366, 4
          %s410 = int_to_ptr.vmem [resolvable:$true] %s409
          %s411 = sshll.u32 %s407, 4
          %s412 = int_to_ptr.hbm [resolvable:$true] %s411
          %414 = dma.vmem_to_hbm [thread:$0]  %s410, 64, %s412, %s363
        $region52: #{tpu_custom_call.1} parent=31 // pred_fallthru
          _
      $region32: #{tpu_custom_call.1} parent=5 // pred_fallthru
        _
      %p415 = scmp.le.s32.totalorder 2, %s22
      // Predicated region
      $region53: #{tpu_custom_call.1} parent=5 // pred_check
        %p416 = pneg %p415
      $region54: #{tpu_custom_call.1} parent=5 // pred_check_branch
        %418 = sbr.rel (%p416) target = $region56
      $region55: #{tpu_custom_call.1} parent=5 // pred_region
        %s419 = ssub.s32 %s22, 2
        // Predicated region
        $region57: #{tpu_custom_call.1} parent=55 // pred_check
          %p420 = pneg %p135
        $region58: #{tpu_custom_call.1} parent=55 // pred_check_branch
          %422 = sbr.rel (%p420) target = $region60
        $region59: #{tpu_custom_call.1} parent=55 // pred_region
          %s423 = sand.u32 %s120, 1
          %s424 = scalar_lea.sflag [#allocation4], %s423
          %s425 = sand.u32 %s120, 1
          %s426 = smul.addr %s425, 4
          %s427 = scalar_lea.vmem [#allocation7], %s426
          %429 = dma.done %s424, 64
        $region60: #{tpu_custom_call.1} parent=55 // pred_fallthru
          _
        // Predicated region
        $region61: #{tpu_custom_call.1} parent=55 // pred_check
          %p430 = pneg %p163
        $region62: #{tpu_custom_call.1} parent=55 // pred_check_branch
          %432 = sbr.rel (%p430) target = $region64
        $region63: #{tpu_custom_call.1} parent=55 // pred_region
          %s433 = sand.u32 %s28, 1
          %s434 = scalar_lea.sflag [#allocation9], %s433
          %s435 = sand.u32 %s148, 1
          %s436 = smul.addr %s435, 4
          %s437 = scalar_lea.vmem [#allocation8], %s436
          %439 = dma.done %s434, 64
        $region64: #{tpu_custom_call.1} parent=55 // pred_fallthru
          _
        // Predicated region
        $region65: #{tpu_custom_call.1} parent=55 // pred_check
          %p440 = pneg %p191
        $region66: #{tpu_custom_call.1} parent=55 // pred_check_branch
          %442 = sbr.rel (%p440) target = $region68
        $region67: #{tpu_custom_call.1} parent=55 // pred_region
          %s443 = sand.u32 %s28, 1
          %s444 = scalar_lea.sflag [#allocation9], %s443
          %s445 = sand.u32 %s176, 1
          %s446 = smul.addr %s445, 4
          %s447 = scalar_lea.vmem [#allocation10], %s446
          %449 = dma.done %s444, 64
        $region68: #{tpu_custom_call.1} parent=55 // pred_fallthru
          _
      $region56: #{tpu_custom_call.1} parent=5 // pred_fallthru
        _
    $region6: #{tpu_custom_call.1} parent=1 // loop_footer
      %s26 = sadd.s32 1, %s22
    $region7: #{tpu_custom_call.1} parent=1 // loop_footer_branch
      %21 = sbr.rel target = $region3
    $region8: #{tpu_custom_call.1} parent=1 // loop_exit
      _
    %450 = vsyncpa [#allocation3], 1
    %s451 = scalar_lea.sflag [#allocation3], 1
    %452 = vsyncpa %s451, 1
    %453 = vsyncpa [#allocation6], 1
    %454 = vsyncpa [#allocation4], 1
    %s455 = scalar_lea.sflag [#allocation4], 1
    %456 = vsyncpa %s455, 1
    %457 = vsyncpa [#allocation9], 1
    %s458 = scalar_lea.sflag [#allocation9], 1
    %459 = vsyncpa %s458, 1

</llo_original>
